<compile_context>
chip_gen: v6e
topology: v6e:2x2x1
jax: 0.10.0
libtpu: 0.0.40
codegen_flags: <defaults>
</compile_context>

<pallas_src>
import jax
import jax.numpy as jnp
from jax import lax
from jax.experimental import pallas as pl
from jax.experimental.pallas import tpu as pltpu


IN_CHANNELS = 20
MID_CH = 10
OUT_CHANNELS = 1

LANE = 128                     # TPU lane width; batch tiles are multiples.


def _round_up(x, m):
    return -(-x // m) * m


def _default_tile():
    """Generation-aware batch tile (lanes per grid step)."""
    try:
        kind = jax.devices()[0].device_kind.lower()
    except Exception:
        return 32768
    if "v5" in kind:           # v5e: 16 MiB default scoped VMEM -> smaller tile
        return 32768
    return 65536               # v6e / v7x (capped at 64K for v7x's 64 MiB VMEM)


def gar_kernel(g_ref, b1_ref, w2t_ref, b2_ref, w3_ref, scal_ref, pred_ref):
    """One lane-major batch tile (batch on the 128-lane axis).

    g_ref   : (11, T) f32   rows 0..9 = (x*wexp) @ W1 (pre-bias), row 10 = x . linear
    b1_ref  : (10, 1)       l1 bias (column, broadcast over lanes)
    w2t_ref : (10, 10)      l2 weight transposed so h2 = w2t @ h1
    b2_ref  : (10, 1)       l2 bias
    w3_ref  : (10, 1)       l3 weight as a column (VPU multiply + sublane reduce)
    scal_ref: (2,)   SMEM   [b3, _max_os]
    pred_ref: (1, T)        lane-dense output tile
    """
    x_ar = g_ref[10:11, :]                                           # (1, T)

    # Layer 1: bias + tanh (the layer-1 matmul was fused with the relayout).
    h = jnp.tanh(g_ref[0:10, :] + b1_ref[...])                       # (10, T)
    # Layer 2 on the MXU.
    h = jnp.tanh(jnp.dot(w2t_ref[...], h,
                         preferred_element_type=jnp.float32) + b2_ref[...])
    # Layer 3: (1,10)@(10,T) fills <1% of the MXU -> VPU mul + sublane reduce.
    mu = jnp.tanh(jnp.sum(h * w3_ref[...], axis=0, keepdims=True) + scal_ref[0])

    pred_ref[...] = mu * scal_ref[1] + x_ar                          # (1, T)


def gar_forward(x, params, *, tile=None):
    """x: (nbatch, in_channels) f32. Returns (predict (nbatch,), sigma (nbatch,))."""
    n, c = x.shape
    m = params["w2"].shape[0]
    x = x.astype(jnp.float32)

    # ---- batch tiling: batch maps to the lane axis. ----
    if tile is None:
        tile = _default_tile()
    # Keep >= 2 grid steps whenever n allows it (v7x megacore: 2 TensorCores).
    half = _round_up(max((n + 1) // 2, 1), LANE)
    tile = max(LANE, min(_round_up(tile, LANE), half))
    grid = (pl.cdiv(n, tile),)

    # ---- the single pass over natural-layout x ----
    # Wc = [W1 * wexp ; linear] (11, 20);  g = Wc @ x^T  (11, N):
    # rows 0..9 = layer-1 pre-activations, row 10 = the linear-AR dot.
    # This replaces the old pad+transpose pass and feeds the kernel lane-major.
    w1s_t = (params["w1"] * params["weight"].reshape(c, 1)).T            # (M, C)
    wc = jnp.concatenate([w1s_t, params["linear"].reshape(1, c)], axis=0)  # (M+1, C)
    g = jnp.einsum("oc,nc->on", wc, x,
                   precision=lax.Precision.HIGHEST)                     # (M+1, N)

    n_out = n
    if n < tile:
        # Tiny batches only: pad to one full lane block (negligible cost).
        g = jnp.pad(g, ((0, 0), (0, tile - n)))
        n_out = tile

    # Small, VMEM-resident parameters (constant index maps -> DMA'd once).
    b1c = params["b1"].reshape(m, 1)
    w2t = params["w2"].T                                  # (M, M)
    b2c = params["b2"].reshape(m, 1)
    w3c = params["w3"].reshape(m, 1)
    scal = jnp.concatenate([params["b3"].reshape(1),
                            params["max_os"].reshape(1)]).astype(jnp.float32)

    resident = lambda a: pl.BlockSpec(a.shape, lambda i: (0, 0))

    pred = pl.pallas_call(
        gar_kernel,
        grid=grid,
        out_shape=jax.ShapeDtypeStruct((1, n_out), jnp.float32),
        in_specs=[
            pl.BlockSpec((m + 1, tile), lambda i: (0, i)),            # g tile
            resident(b1c), resident(w2t), resident(b2c), resident(w3c),
            pl.BlockSpec(memory_space=pltpu.MemorySpace.SMEM),        # [b3, max_os]
        ],
        out_specs=pl.BlockSpec((1, tile), lambda i: (0, i)),          # lane-dense
        compiler_params=pltpu.CompilerParams(
            dimension_semantics=("parallel",),                        # v7x: 2 TCs
            vmem_limit_bytes=48 * 1024 * 1024),
    )(g, b1c, w2t, b2c, w3c, scal)

    predict = pred.reshape(-1)[:n]
    # sigma is a single scalar broadcast; no need to stream (N,) through a kernel.
    sigma = jnp.full((n,), jnp.exp(params["sigma"][0, 0]), jnp.float32)
    return predict, sigma


def make_params(key):
    """Deterministic parameter init matching the shapes in GAR_model.__init__."""
    k1, k2, k3, k4, k5, k6 = jax.random.split(key, 6)
    c, m, o = IN_CHANNELS, MID_CH, OUT_CHANNELS

    def lin_init(kw, kb, fan_in, fan_out):
        bound = 1.0 / jnp.sqrt(fan_in)
        # PyTorch Linear stores (out, in); we keep (in, out) here.
        w = jax.random.uniform(kw, (fan_in, fan_out), jnp.float32, -bound, bound)
        b = jax.random.uniform(kb, (1, fan_out), jnp.float32, -bound, bound)
        return w, b

    w1, b1 = lin_init(k1, k2, c, m)
    w2, b2 = lin_init(k3, k4, m, m)
    w3, b3 = lin_init(k5, k6, m, o)

    return {
        "w1": w1, "b1": b1,
        "w2": w2, "b2": b2,
        "w3": w3, "b3": b3,
        "linear": (1.0 / jnp.arange(1, c + 1, dtype=jnp.float32)).reshape(1, c),
        "weight": jnp.exp(-jnp.arange(c, dtype=jnp.float32) / c * 5.0).reshape(1, c),
        "max_os": jnp.ones((1, 1), jnp.float32),   # _max_os = ones(1) * 1
        "sigma": jnp.zeros((1, 1), jnp.float32),   # sigma   = ones(1) * 0
    }


def gar_reference(x, p):
    """Pure-JAX, feature-major transcription of GAR_model.forward (true f32)."""
    hp = lax.Precision.HIGHEST
    x_ar = jnp.sum(x * p["linear"], axis=-1)
    h = jnp.tanh(jnp.dot(x * p["weight"], p["w1"], precision=hp) + p["b1"])
    h = jnp.tanh(jnp.dot(h, p["w2"], precision=hp) + p["b2"])
    mu = jnp.tanh(jnp.dot(h, p["w3"], precision=hp) + p["b3"]) * p["max_os"][0, 0]
    predict = mu.reshape(-1) + x_ar
    sigma = jnp.zeros_like(predict) + jnp.exp(p["sigma"][0, 0])
    return predict, sigma


if __name__ == "__main__":
    key = jax.random.PRNGKey(0)
    kx, kp = jax.random.split(key)
    params = make_params(kp)
    # Exercise the learnable scalars with non-default values.
    params["max_os"] = jnp.full((1, 1), 1.5, jnp.float32)
    params["sigma"] = jnp.full((1, 1), 0.3, jnp.float32)

    # Case 1: tiny batch -> single padded 128-lane block, grid of 1.
    n1 = 8
    x1 = jax.random.normal(kx, (n1, IN_CHANNELS), jnp.float32)
    pred1, sig1 = gar_forward(x1, params)
    jax.block_until_ready((pred1, sig1))
    rp1, rs1 = gar_reference(x1, params)
    assert pred1.shape == (n1,) and sig1.shape == (n1,)
    assert jnp.allclose(pred1, rp1, atol=2e-5, rtol=2e-5)
    assert jnp.allclose(sig1, rs1, atol=1e-6)

    # Case 2: ragged batch with a forced small tile -> 3-step grid with a
    # partial final block (no wrapper-side padding; pad lanes are sliced off).
    n2 = 333
    x2 = jax.random.normal(jax.random.fold_in(kx, 1), (n2, IN_CHANNELS), jnp.float32)
    pred2, sig2 = gar_forward(x2, params, tile=128)
    jax.block_until_ready((pred2, sig2))
    rp2, rs2 = gar_reference(x2, params)
    assert pred2.shape == (n2,) and sig2.shape == (n2,)
    assert jnp.allclose(pred2, rp2, atol=2e-5, rtol=2e-5)
    assert jnp.allclose(sig2, rs2, atol=1e-6)

    print("KERNEL_OK")
</pallas_src>

<mosaic_0001>
module attributes {stable_mosaic.version = 11 : i64} {
  func.func @gar_kernel(%arg0: i32, %arg1: memref<11x128xf32, #tpu.memory_space<vmem>>, %arg2: memref<10x1xf32, #tpu.memory_space<vmem>>, %arg3: memref<10x10xf32, #tpu.memory_space<vmem>>, %arg4: memref<10x1xf32, #tpu.memory_space<vmem>>, %arg5: memref<10x1xf32, #tpu.memory_space<vmem>>, %arg6: memref<2xf32, #tpu.memory_space<smem>>, %arg7: memref<1x128xf32, #tpu.memory_space<vmem>>) attributes {dimension_semantics = [#tpu.dimension_semantics<parallel>], iteration_bounds = array<i64: 1>, scalar_prefetch = 0 : i64, scratch_operands = 0 : i64, tpu.core_type = #tpu.core_type<tc>, window_params = [{transform_indices = @transform_0, window_bounds = array<i64: 11, 128>}, {pipeline_mode = #tpu.pipeline_mode<synchronous>, transform_indices = @transform_1, window_bounds = array<i64: 10, 1>}, {pipeline_mode = #tpu.pipeline_mode<synchronous>, transform_indices = @transform_2, window_bounds = array<i64: 10, 10>}, {pipeline_mode = #tpu.pipeline_mode<synchronous>, transform_indices = @transform_3, window_bounds = array<i64: 10, 1>}, {pipeline_mode = #tpu.pipeline_mode<synchronous>, transform_indices = @transform_4, window_bounds = array<i64: 10, 1>}, {transform_indices = @transform_5, window_bounds = array<i64: 2>}, {transform_indices = @transform_6, window_bounds = array<i64: 1, 128>}]} {
    %c10 = arith.constant 10 : index
    %c0 = arith.constant 0 : index
    %0 = vector.load %arg1[%c10, %c0] : memref<11x128xf32, #tpu.memory_space<vmem>>, vector<1x128xf32>
    %c0_0 = arith.constant 0 : index
    %c0_1 = arith.constant 0 : index
    %1 = vector.load %arg1[%c0_0, %c0_1] : memref<11x128xf32, #tpu.memory_space<vmem>>, vector<10x128xf32>
    %c0_2 = arith.constant 0 : index
    %c0_3 = arith.constant 0 : index
    %2 = vector.load %arg2[%c0_2, %c0_3] : memref<10x1xf32, #tpu.memory_space<vmem>>, vector<10x1xf32>
    %3 = vector.broadcast %2 : vector<10x1xf32> to vector<10x128xf32>
    %4 = arith.addf %1, %3 : vector<10x128xf32>
    %5 = math.tanh %4 : vector<10x128xf32>
    %c0_4 = arith.constant 0 : index
    %c0_5 = arith.constant 0 : index
    %6 = vector.load %arg3[%c0_4, %c0_5] : memref<10x10xf32, #tpu.memory_space<vmem>>, vector<10x10xf32>
    %cst = arith.constant dense<0.000000e+00> : vector<10x128xf32>
    %7 = tpu.matmul %6, %5, %cst {dimension_numbers = #tpu.dot_dimension_numbers<[1], [0], [0], [1], [0, 0, 1, 1], [], []>} : vector<10x10xf32>, vector<10x128xf32>, vector<10x128xf32> -> vector<10x128xf32>
    %c0_6 = arith.constant 0 : index
    %c0_7 = arith.constant 0 : index
    %8 = vector.load %arg4[%c0_6, %c0_7] : memref<10x1xf32, #tpu.memory_space<vmem>>, vector<10x1xf32>
    %9 = vector.broadcast %8 : vector<10x1xf32> to vector<10x128xf32>
    %10 = arith.addf %7, %9 : vector<10x128xf32>
    %11 = math.tanh %10 : vector<10x128xf32>
    %c0_8 = arith.constant 0 : index
    %c0_9 = arith.constant 0 : index
    %12 = vector.load %arg5[%c0_8, %c0_9] : memref<10x1xf32, #tpu.memory_space<vmem>>, vector<10x1xf32>
    %13 = vector.broadcast %12 : vector<10x1xf32> to vector<10x128xf32>
    %14 = arith.mulf %11, %13 : vector<10x128xf32>
    %cst_10 = arith.constant dense<0.000000e+00> : vector<128xf32>
    %15 = vector.multi_reduction <add>, %14, %cst_10 [0] : vector<10x128xf32> to vector<128xf32>
    %16 = vector.shape_cast %15 : vector<128xf32> to vector<1x128xf32>
    %c0_11 = arith.constant 0 : index
    %17 = memref.load %arg6[%c0_11] : memref<2xf32, #tpu.memory_space<smem>>
    %18 = vector.broadcast %17 : f32 to vector<1x128xf32>
    %19 = arith.addf %16, %18 : vector<1x128xf32>
    %20 = math.tanh %19 : vector<1x128xf32>
    %c1 = arith.constant 1 : index
    %21 = memref.load %arg6[%c1] : memref<2xf32, #tpu.memory_space<smem>>
    %22 = vector.broadcast %21 : f32 to vector<1x128xf32>
    %23 = arith.mulf %20, %22 : vector<1x128xf32>
    %24 = arith.addf %23, %0 : vector<1x128xf32>
    %c0_12 = arith.constant 0 : index
    %c0_13 = arith.constant 0 : index
    %25 = vector.load %arg7[%c0_12, %c0_13] : memref<1x128xf32, #tpu.memory_space<vmem>>, vector<1x128xf32>
    tpu.vector_store %arg7[%c0_12, %c0_13], %24 {strides = array<i32>} : memref<1x128xf32, #tpu.memory_space<vmem>>, vector<1x128xf32>,
    return
  }
  func.func @transform_0(%arg0: i32) -> (i32, i32) {
    %c0_i32 = arith.constant 0 : i32
    %c0_i32_0 = arith.constant 0 : i32
    return %c0_i32, %arg0 : i32, i32
  }
  func.func @transform_1(%arg0: i32) -> (i32, i32) {
    %c0_i32 = arith.constant 0 : i32
    %c0_i32_0 = arith.constant 0 : i32
    %c0_i32_1 = arith.constant 0 : i32
    return %c0_i32, %c0_i32_0 : i32, i32
  }
  func.func @transform_2(%arg0: i32) -> (i32, i32) {
    %c0_i32 = arith.constant 0 : i32
    %c0_i32_0 = arith.constant 0 : i32
    %c0_i32_1 = arith.constant 0 : i32
    return %c0_i32, %c0_i32_0 : i32, i32
  }
  func.func @transform_3(%arg0: i32) -> (i32, i32) {
    %c0_i32 = arith.constant 0 : i32
    %c0_i32_0 = arith.constant 0 : i32
    %c0_i32_1 = arith.constant 0 : i32
    return %c0_i32, %c0_i32_0 : i32, i32
  }
  func.func @transform_4(%arg0: i32) -> (i32, i32) {
    %c0_i32 = arith.constant 0 : i32
    %c0_i32_0 = arith.constant 0 : i32
    %c0_i32_1 = arith.constant 0 : i32
    return %c0_i32, %c0_i32_0 : i32, i32
  }
  func.func @transform_5(%arg0: i32) -> i32 {
    %c0_i32 = arith.constant 0 : i32
    %c0_i32_0 = arith.constant 0 : i32
    return %c0_i32 : i32
  }
  func.func @transform_6(%arg0: i32) -> (i32, i32) {
    %c0_i32 = arith.constant 0 : i32
    %c0_i32_0 = arith.constant 0 : i32
    return %c0_i32, %arg0 : i32, i32
  }
}

</mosaic_0001>

<llo_original>
// kernel: tpu_custom_call.1
$region0: #{tpu_custom_call.1}
  #allocation0 [shape = 'u32[]', space=smem, size = 0x4, offset = 0x4, fixed_abs, tag = 'smem constant byte address 0x4 - core index']
  #allocation1 [shape = 'u32[144,128]{1,0:T(1,128)}', space=vmem, size = 0x12000, scoped, tag = 'internal scratch']
  %s0 = inlined_call_operand.vmem [shape: f32[11,128], index: 0, kind: input, shape index: {}]
  %s1 = inlined_call_operand.vmem [shape: f32[10,1], index: 1, kind: input, shape index: {}]
  %s2 = inlined_call_operand.vmem [shape: f32[10,10], index: 2, kind: input, shape index: {}]
  %s3 = inlined_call_operand.vmem [shape: f32[10,1], index: 3, kind: input, shape index: {}]
  %s4 = inlined_call_operand.vmem [shape: f32[10,1], index: 4, kind: input, shape index: {}]
  %s5 = inlined_call_operand.vmem [shape: f32[2], index: 5, kind: input, shape index: {}]
  %s6 = inlined_call_operand.hbm [shape: f32[1,128], index: 6, kind: output, shape index: {}]
  %s7 = sld [smem:[#allocation0]]
  $region38: #{tpu_custom_call.1} parent=0
    _
  %s9 = ssub.s32 1, %s7
  %s10 = scalar_select 0, %s9, %s7
  $region1: #{tpu_custom_call.1} parent=0
    #allocation2 [shape = 'u8[512]{0}', space=smem, size = 0x200, scoped, tag = 'input window, operand 5, single buffered']
    #allocation3 [shape = 's32[1]{0}', space=sflag, size = 0x4, scoped, tag = 'scoped memory for tpu_custom_call.1']
    #allocation4 [shape = 's32[1]{0}', space=sflag, size = 0x4, scoped, tag = 'scoped memory for tpu_custom_call.1']
    #allocation5 [shape = 'u8[512]{0}', space=vmem, size = 0x400, scoped, tag = 'output window, operand 0, single buffered']
    %11 = vsyncpa [#allocation4], 0
    %12 = vsyncpa [#allocation3], 0
    // Predicated region
    $region2: #{tpu_custom_call.1} parent=1 // pred_check
      _
    $region3: #{tpu_custom_call.1} parent=1 // pred_check_branch
      %14 = sbr.rel (0) target = $region5
    $region4: #{tpu_custom_call.1} parent=1 // pred_region
      _
    $region5: #{tpu_custom_call.1} parent=1 // pred_fallthru
      _
    // Predicated region
    $region6: #{tpu_custom_call.1} parent=1 // pred_check
      _
    $region7: #{tpu_custom_call.1} parent=1 // pred_check_branch
      %16 = sbr.rel (0) target = $region9
    $region8: #{tpu_custom_call.1} parent=1 // pred_region
      _
    $region9: #{tpu_custom_call.1} parent=1 // pred_fallthru
      _
    // Predicated region
    $region10: #{tpu_custom_call.1} parent=1 // pred_check
      _
    $region11: #{tpu_custom_call.1} parent=1 // pred_check_branch
      %18 = sbr.rel (0) target = $region13
    $region12: #{tpu_custom_call.1} parent=1 // pred_region
      _
    $region13: #{tpu_custom_call.1} parent=1 // pred_fallthru
      _
    // Predicated region
    $region14: #{tpu_custom_call.1} parent=1 // pred_check
      _
    $region15: #{tpu_custom_call.1} parent=1 // pred_check_branch
      %20 = sbr.rel (0) target = $region17
    $region16: #{tpu_custom_call.1} parent=1 // pred_region
      _
    $region17: #{tpu_custom_call.1} parent=1 // pred_fallthru
      _
    // Predicated region
    $region18: #{tpu_custom_call.1} parent=1 // pred_check
      _
    $region19: #{tpu_custom_call.1} parent=1 // pred_check_branch
      %22 = sbr.rel (0) target = $region21
    $region20: #{tpu_custom_call.1} parent=1 // pred_region
      _
    $region21: #{tpu_custom_call.1} parent=1 // pred_fallthru
      _
    // Predicated region
    $region22: #{tpu_custom_call.1} parent=1 // pred_check
      _
    $region23: #{tpu_custom_call.1} parent=1 // pred_check_branch
      %24 = sbr.rel (0) target = $region25
    $region24: #{tpu_custom_call.1} parent=1 // pred_region
      %s26 = ssub.s32 16, 16
      %27 = vsyncadd [#allocation4], %s26
      %s29 = sshll.u32 %s5, 4
      %s30 = int_to_ptr.vmem [resolvable:$true] %s29
      %32 = dma.vmem_to_smem %s30, 16, [#allocation2], [#allocation4]
    $region25: #{tpu_custom_call.1} parent=1 // pred_fallthru
      _
    // Predicated region
    $region26: #{tpu_custom_call.1} parent=1 // pred_check
      _
    $region27: #{tpu_custom_call.1} parent=1 // pred_check_branch
      %34 = sbr.rel (0) target = $region29
    $region28: #{tpu_custom_call.1} parent=1 // pred_region
      %35 = dma.done [#allocation4], 16
    $region29: #{tpu_custom_call.1} parent=1 // pred_fallthru
      _
    %36 = sfence
    %v37 = vld [vmem:[%s0 + $0xa] sm:$0x1]
    %v38 = vld [vmem:[%s0] sm:$0xff]
    %v39 = vld [vmem:[%s0 + $0x8] sm:$0x3]
    %v40 = vld [vmem:[%s1] sm:$0xff]
    %v41 = vld [vmem:[%s1 + $0x8] sm:$0x3]
    %43 = vset.pattern.permute.xlu0 0
    %44 = vperm.xlu0 %43, %v40
    %v45 = vpop.permute.xlu0 %44
    %48 = vset.pattern.permute.xlu0 0
    %49 = vperm.xlu0 %48, %v41
    %v50 = vpop.permute.xlu0 %49
    %v52 = vadd.f32 %v38, %v45
    %v53 = vadd.f32 %v39, %v50
    %v54 = vtanh.pop %v52
    %v55 = vtanh.pop %v53
    %v56 = vld [vmem:[%s2] sm:$0xff]
    %v57 = vld [vmem:[%s2 + $0x8] sm:$0x3]
    %v58 = vld [vmem:[%s3] sm:$0xff]
    %v59 = vld [vmem:[%s3 + $0x8] sm:$0x3]
    %61 = vset.pattern.permute.xlu0 0
    %62 = vperm.xlu0 %61, %v58
    %v63 = vpop.permute.xlu0 %62
    %66 = vset.pattern.permute.xlu0 0
    %67 = vperm.xlu0 %66, %v59
    %v68 = vpop.permute.xlu0 %67
    %vm70 = vcmask 80896
    %v72 = vsel %vm70, %v56, 0
    %v75 = vsel %vm70, %v57, 0
    %vm77 = vcmask 1041408
    %v79 = vsel %vm77, %v55, 0
    %81 = vmatprep.subr.mxu0 0.0
    %82 = vmatpush1.msra.mxu0 0.0
    %83 = vmatprep.subr.mxu0 0.0
    %84 = vmatpush1.msra.mxu0 0.0
    %85 = vmatprep.subr.mxu0 0.0
    %86 = vmatpush1.msra.mxu0 0.0
    %87 = vmatprep.subr.mxu0 0.0
    %88 = vmatpush1.msra.mxu0 0.0
    %89 = vmatprep.subr.mxu0 0.0
    %90 = vmatpush1.msra.mxu0 0.0
    %91 = vmatprep.subr.mxu0 0.0
    %92 = vmatpush1.msra.mxu0 0.0
    %93 = vmatprep.subr.mxu0 0.0
    %94 = vmatpush1.msra.mxu0 0.0
    %95 = vmatprep.subr.mxu0 0.0
    %96 = vmatpush1.msra.mxu0 0.0
    %97 = vmatprep.subr.mxu0 0.0
    %98 = vmatpush1.msra.mxu0 0.0
    %99 = vmatprep.subr.mxu0 0.0
    %100 = vmatpush1.msra.mxu0 0.0
    %101 = vmatprep.subr.mxu0 0.0
    %102 = vmatpush1.msra.mxu0 0.0
    %103 = vmatprep.subr.mxu0 0.0
    %104 = vmatpush1.msra.mxu0 0.0
    %105 = vmatprep.subr.mxu0 0.0
    %106 = vmatpush1.msra.mxu0 0.0
    %107 = vmatprep.subr.mxu0 0.0
    %108 = vmatpush1.msra.mxu0 0.0
    %109 = vmatprep.subr.mxu0 0.0
    %110 = vmatpush1.msra.mxu0 %v79
    %111 = vmatprep.subr.mxu0 0.0
    %112 = vmatpush1.msra.mxu0 %v54
    %113 = vmatprep.subr.mxu0 0.0
    %114 = vmatpush2.msra.mxu0 0.0
    %115 = vmatprep.subr.mxu0 0.0
    %116 = vmatpush2.msra.mxu0 0.0
    %117 = vmatprep.subr.mxu0 0.0
    %118 = vmatpush2.msra.mxu0 0.0
    %119 = vmatprep.subr.mxu0 0.0
    %120 = vmatpush2.msra.mxu0 0.0
    %121 = vmatprep.subr.mxu0 0.0
    %122 = vmatpush2.msra.mxu0 0.0
    %123 = vmatprep.subr.mxu0 0.0
    %124 = vmatpush2.msra.mxu0 0.0
    %125 = vmatprep.subr.mxu0 0.0
    %126 = vmatpush2.msra.mxu0 0.0
    %127 = vmatprep.subr.mxu0 0.0
    %128 = vmatpush2.msra.mxu0 0.0
    %129 = vmatprep.subr.mxu0 0.0
    %130 = vmatpush2.msra.mxu0 0.0
    %131 = vmatprep.subr.mxu0 0.0
    %132 = vmatpush2.msra.mxu0 0.0
    %133 = vmatprep.subr.mxu0 0.0
    %134 = vmatpush2.msra.mxu0 0.0
    %135 = vmatprep.subr.mxu0 0.0
    %136 = vmatpush2.msra.mxu0 0.0
    %137 = vmatprep.subr.mxu0 0.0
    %138 = vmatpush2.msra.mxu0 0.0
    %139 = vmatprep.subr.mxu0 0.0
    %140 = vmatpush2.msra.mxu0 0.0
    %141 = vmatprep.subr.mxu0 0.0
    %142 = vmatpush2.msra.mxu0 0.0
    %143 = vmatprep.subr.mxu0 0.0
    %144 = vmatpush2.msra.mxu0 0.0
    %145 = vmatprep.mubr.f32.mxu0 0.0
    %146 = vmatmul.mubr.f32.gmra.mxu0 %v72
    %v147 = vpop.f32.mrf.mxu0
    %v148 = vadd.f32 %v63, %v147
    %v149 = vpop.f32.mrf.mxu0
    %150 = vmatprep.mubr.f32.mxu0 0.0
    %151 = vmatmul.mubr.f32.gmra.mxu0 %v75
    %v152 = vpop.f32.mrf.mxu0
    %v153 = vadd.f32 %v68, %v152
    %v154 = vpop.f32.mrf.mxu0
    %155 = vdwg.mxu0
    %v156 = vtanh.pop %v148
    %v157 = vtanh.pop %v153
    %v158 = vld [vmem:[%s4] sm:$0xff]
    %v159 = vld [vmem:[%s4 + $0x8] sm:$0x3]
    %161 = vset.pattern.permute.xlu0 0
    %162 = vperm.xlu0 %161, %v158
    %v163 = vpop.permute.xlu0 %162
    %166 = vset.pattern.permute.xlu0 0
    %167 = vperm.xlu0 %166, %v159
    %v168 = vpop.permute.xlu0 %167
    %v170 = vmul.f32 %v156, %v163
    %v171 = vmul.f32 %v157, %v168
    %v172 = vsel %vm77, %v171, 0.0
    %v173 = vadd.f32 %v170, %v172
    %v174 = vrot.slane %v173, 4
    %v175 = vadd.f32 %v173, %v174
    %v176 = vrot.slane %v175, 2
    %v177 = vadd.f32 %v175, %v176
    %v178 = vrot.slane %v177, 1
    %v179 = vadd.f32 %v177, %v178
    %s180 = sld [smem:[#allocation2]]
    %v181 = vstv %s180
    %v182 = vadd.f32 %v179, %v181
    %v183 = vtanh.pop %v182
    %s184 = sld [smem:[#allocation2 + $0x1]]
    %v185 = vstv %s184
    %v186 = vmul.f32 %v183, %v185
    %v187 = vadd.f32 %v186, %v37
    %188 = vst [vmem:[#allocation5] sm:$0x1] %v187
    // Predicated region
    $region30: #{tpu_custom_call.1} parent=1 // pred_check
      _
    $region31: #{tpu_custom_call.1} parent=1 // pred_check_branch
      %190 = sbr.rel (0) target = $region33
    $region32: #{tpu_custom_call.1} parent=1 // pred_region
      %s192 = ssub.s32 16, 16
      %193 = vsyncadd [#allocation3], %s192
      %s195 = sshll.u32 [#allocation5], 4
      %s196 = int_to_ptr.vmem [resolvable:$true] %s195
      %198 = dma.vmem_to_hbm [thread:$0]  %s196, 16, %s6, [#allocation3]
    $region33: #{tpu_custom_call.1} parent=1 // pred_fallthru
      _
    // Predicated region
    $region34: #{tpu_custom_call.1} parent=1 // pred_check
      _
    $region35: #{tpu_custom_call.1} parent=1 // pred_check_branch
      %200 = sbr.rel (0) target = $region37
    $region36: #{tpu_custom_call.1} parent=1 // pred_region
      %201 = dma.done [#allocation3], 16
    $region37: #{tpu_custom_call.1} parent=1 // pred_fallthru
      _
    %202 = vsyncpa [#allocation3], 1
    %203 = vsyncpa [#allocation4], 1

</llo_original>
